<compile_context>
chip_gen: v6e
topology: v6e:2x2x1
jax: 0.10.0
libtpu: 0.0.40
codegen_flags: <defaults>
</compile_context>

<pallas_src>
import functools
from typing import NamedTuple

import jax
import jax.numpy as jnp
from jax import lax
from jax.experimental import pallas as pl
from jax.experimental.pallas import tpu as pltpu

_BIG = 1.0e12


# ----------------------------------------------------------------------------
# Hardware model (per-generation tiling / precision decisions)
# ----------------------------------------------------------------------------
class _HW(NamedTuple):
    vmem_budget_bytes: int      # what we allow one block's working set to use
    vmem_request_cap: int       # max scoped-VMEM limit we will ever request
    target_block_bytes: int     # raw-input bytes per block we aim for
    num_tensorcores: int        # 2 on v7x, else 1
    bf16_valu: bool             # v6e / v7x have bf16 VALU; v5e and older do not


def _tpu_hw() -> _HW:
    kind = ""
    try:
        dev = jax.devices()[0]
        if dev.platform == "tpu":
            kind = (getattr(dev, "device_kind", "") or "").lower()
    except Exception:
        kind = ""

    is_v7 = ("v7" in kind) or ("tpu7" in kind)
    is_v6 = "v6" in kind
    is_old = ("v2" in kind) or ("v3" in kind)

    if is_v7:
        vmem_cap, num_tc = 64 << 20, 2
    elif is_old:
        vmem_cap, num_tc = 16 << 20, 1
    elif kind:                      # v4 / v5e / v5p / v6e: 128 MiB, 1 TC
        vmem_cap, num_tc = 128 << 20, 1
    else:                           # unknown backend: be conservative
        try:
            vmem_cap = int(pltpu.get_tpu_info().vmem_capacity_bytes)
        except Exception:
            vmem_cap = 64 << 20
        num_tc = 1

    if is_v7:
        target = 2 << 20            # 64 MiB VMEM: keep raw-input blocks modest
    elif is_old:
        target = 1 << 20
    elif vmem_cap >= (128 << 20):
        target = 6 << 20            # v5e/v6e: DMA-side win from bigger blocks
    else:
        target = 2 << 20

    return _HW(
        vmem_budget_bytes=int(vmem_cap * 0.6),
        vmem_request_cap=int(vmem_cap * 0.7),
        target_block_bytes=target,
        num_tensorcores=num_tc,
        bf16_valu=bool(is_v6 or is_v7),
    )


def _choose_tiles(R, C, in_bytes, interm_bytes, hw, tile_r=None, tile_c=None):
    """Pick (tile_r, tile_c) from a per-generation VMEM model.

    VMEM model per block element: 2x double-buffered inputs + the f32/bf16
    intermediates Mosaic will materialize (masks, negation, selects, subs,
    exps).  tile_r is *shrunk* to fit, rather than only clamping the limit.
    """
    per_elem = 2 * in_bytes + interm_bytes
    budget_elems = max((hw.vmem_budget_bytes - (2 << 20)) // per_elem, 32 * 128)
    target_elems = max(hw.target_block_bytes // max(in_bytes, 1), 32 * 128)
    block_elems = min(budget_elems, target_elems)

    # ---- reduction (C) axis: split only when a whole-C block would leave
    # fewer than 32 rows per block inside the VMEM budget (v7x / huge L). ----
    if tile_c is None:
        if C <= max(block_elems // 32, 4096):
            tile_c = C
        else:
            tile_c = C
            d = (min(block_elems // 32, C) // 128) * 128
            while d >= 128:
                if C % d == 0:
                    tile_c = d
                    break
                d -= 128
            # TODO(synk): mask ragged C tails (broadcasted_iota lane compare)
            # so a C without a multiple-of-128 divisor can also be split.
    tile_c = int(tile_c)

    # ---- row axis ----
    if tile_r is None:
        t = max(block_elems // tile_c, 32)
        t = max(32, (t // 32) * 32)          # 32-sublane multiple: safe for
        t = min(t, 4096)                     # f32 / bf16 / int8 packing
        if t >= R:
            t = R                            # block dim == array dim: legal
        elif hw.num_tensorcores >= 2 and R >= 64:
            # Only on 2-TC parts (v7x): keep >= 2 row tiles, split evenly.
            t = min(t, ((pl.cdiv(R, 2) + 31) // 32) * 32)
            n = pl.cdiv(R, t)
            if n > 1 and n % 2 == 1:
                t = max(32, ((pl.cdiv(R, n + 1) + 31) // 32) * 32)
        tile_r = t
    return int(tile_r), tile_c


# ----------------------------------------------------------------------------
# Kernel
# ----------------------------------------------------------------------------
def _global_ptr_loss_kernel(y_pred_ref, y_true_ref, out_ref,
                            m_neg_ref, s_neg_ref, m_pos_ref, s_pos_ref,
                            *, rows_total, use_low_precision):
    """Online logsumexp over the C (lane) axis, one masked partial sum per tile.

    y_pred_ref : (tile_r, tile_c) predictions (native dtype), VMEM
    y_true_ref : (tile_r, tile_c) 0/1 labels (int / float / bool), VMEM
    out_ref    : (1, 1, 1) f32 partial sum of per-row losses for this row tile
    *_ref      : (tile_r, 1) f32 online-LSE state (running max / rescaled sum)
    """
    i = pl.program_id(0)
    c = pl.program_id(1)
    num_c = pl.num_programs(1)
    block_rows = m_neg_ref.shape[0]

    @pl.when(c == 0)
    def _init():
        # Online-LSE state seeded with the implicit appended 0 logit:
        #   m = 0, s = exp(0 - 0) = 1   =>   lse = m + log(s) = lse([x, 0]).
        m_neg_ref[...] = jnp.zeros_like(m_neg_ref)
        s_neg_ref[...] = jnp.ones_like(s_neg_ref)
        m_pos_ref[...] = jnp.zeros_like(m_pos_ref)
        s_pos_ref[...] = jnp.ones_like(s_pos_ref)

    yp = y_pred_ref[...]
    if not use_low_precision:
        yp = yp.astype(jnp.float32)          # v5e / old parts: f32 VALU path
    is_pos = y_true_ref[...] != 0
    neg_big = jnp.asarray(-_BIG, dtype=yp.dtype)

    # Select-based masking (folds the (1 - 2*y_true) sign flip). Compare /
    # negate / select / max are exact in bf16, so doing them in the native
    # dtype keeps bit-parity with the f32 reference while halving VALU work
    # on v6e/v7x.
    x_neg = jnp.where(is_pos, neg_big, yp)
    x_pos = jnp.where(is_pos, -yp, neg_big)

    def update(x, m_ref, s_ref):
        m_old = m_ref[...]                                            # f32
        m_blk = jnp.max(x, axis=-1, keepdims=True).astype(jnp.float32)
        m_new = jnp.maximum(m_old, m_blk)
        # f32 only from here on: (x - m), exp, sum.
        x32 = x.astype(jnp.float32)
        s_blk = jnp.sum(jnp.exp(x32 - m_new), axis=-1, keepdims=True)
        s_ref[...] = s_ref[...] * jnp.exp(m_old - m_new) + s_blk
        m_ref[...] = m_new

    update(x_neg, m_neg_ref, s_neg_ref)
    update(x_pos, m_pos_ref, s_pos_ref)

    @pl.when(c == num_c - 1)
    def _finalize():
        loss_rows = (m_neg_ref[...] + jnp.log(s_neg_ref[...])) \
                  + (m_pos_ref[...] + jnp.log(s_pos_ref[...]))        # (tile_r,1)
        # Mask rows >= R of a partial last tile (padded rows hold garbage).
        row_ids = i * block_rows + lax.broadcasted_iota(
            jnp.int32, loss_rows.shape, 0)
        masked = jnp.where(row_ids < rows_total, loss_rows, 0.0)
        # One f32 per tile: lane-dense-enough writeback, no (tile_r,1)
        # masked-column stores.
        out_ref[0] = jnp.sum(masked, axis=0, keepdims=True)


# ----------------------------------------------------------------------------
# Wrapper
# ----------------------------------------------------------------------------
@functools.partial(jax.jit, static_argnames=("tile_r", "tile_c"))
def global_ptr_loss(y_pred, y_true, *, tile_r=None, tile_c=None):
    """Pallas implementation of GlobalPtrLoss.forward.

    Args:
      y_pred: (B, n_labels, L, L) predictions (any float dtype).
      y_true: (B, n_labels, L, L) binary labels (float / int / bool).
    Returns:
      scalar f32 loss: mean over B*n_labels rows of (neg_loss + pos_loss).
    """
    B, n_labels, L1, L2 = y_pred.shape
    R = B * n_labels
    C = L1 * L2

    # Reshape only (free metadata op); no pad, no wrapper-side cast: inputs
    # cross the pallas_call boundary in their native dtypes.
    yp = y_pred.reshape(R, C)
    yt = y_true.reshape(R, C)

    hw = _tpu_hw()
    use_low_precision = bool(yp.dtype == jnp.bfloat16 and hw.bf16_valu)
    in_bytes = yp.dtype.itemsize + yt.dtype.itemsize
    # Materialized intermediates per element (mask, 2 masked arrays, negate,
    # subs, exps, ...): ~7 slots; bf16 pre-exp stage shrinks some of them.
    interm_bytes = 28 if use_low_precision else 36

    tile_r, tile_c = _choose_tiles(R, C, in_bytes, interm_bytes, hw,
                                   tile_r, tile_c)
    num_r = pl.cdiv(R, tile_r)
    num_c = pl.cdiv(C, tile_c)

    # Scoped-VMEM request from the same model; only raise the limit when the
    # block actually needs it (keeps small shapes working on every generation).
    per_elem = 2 * in_bytes + interm_bytes
    block_bytes = tile_r * tile_c * per_elem + 4 * tile_r * 4 + (1 << 20)
    cp_kwargs = dict(dimension_semantics=("parallel", "arbitrary"))
    if block_bytes > (24 << 20):
        cp_kwargs["vmem_limit_bytes"] = int(
            min(block_bytes + (8 << 20), hw.vmem_request_cap))

    kernel = functools.partial(
        _global_ptr_loss_kernel,
        rows_total=R,
        use_low_precision=use_low_precision,
    )

    # TODO(synk): optional v5e-only variant with bit-packed labels (1 bit/elem)
    # if the producer can be changed; skipped here (extra unpack VALU ops hurt
    # the already-VALU-bound v6e/v7x path).
    partials = pl.pallas_call(
        kernel,
        out_shape=jax.ShapeDtypeStruct((num_r, 1, 1), jnp.float32),
        grid_spec=pltpu.PrefetchScalarGridSpec(
            num_scalar_prefetch=0,
            grid=(num_r, num_c),
            in_specs=[
                pl.BlockSpec((tile_r, tile_c), lambda i, c: (i, c)),
                pl.BlockSpec((tile_r, tile_c), lambda i, c: (i, c)),
            ],
            out_specs=pl.BlockSpec((1, 1, 1), lambda i, c: (i, 0, 0)),
            scratch_shapes=[pltpu.VMEM((tile_r, 1), jnp.float32)] * 4,
        ),
        compiler_params=pltpu.CompilerParams(**cp_kwargs),
    )(yp, yt)

    # Final mean over R rows: trivial glue vs. the R*C input read.
    return jnp.sum(partials) / R


# ----------------------------------------------------------------------------
# Pure-JAX reference matching the PyTorch module
# ----------------------------------------------------------------------------
def _reference_loss(y_pred, y_true):
    B, n_labels = y_true.shape[:2]
    yt = y_true.reshape(B * n_labels, -1).astype(jnp.float32)
    yp = y_pred.reshape(B * n_labels, -1).astype(jnp.float32)
    yp = (1.0 - 2.0 * yt) * yp
    y_neg = yp - yt * _BIG
    y_pos = yp - (1.0 - yt) * _BIG
    zeros = jnp.zeros_like(yp[..., :1])
    y_neg = jnp.concatenate([y_neg, zeros], axis=-1)
    y_pos = jnp.concatenate([y_pos, zeros], axis=-1)
    neg_loss = jax.scipy.special.logsumexp(y_neg, axis=-1)
    pos_loss = jax.scipy.special.logsumexp(y_pos, axis=-1)
    return jnp.mean(neg_loss + pos_loss)


if __name__ == "__main__":
    key = jax.random.PRNGKey(0)
    k1, k2, k3, k4 = jax.random.split(key, 4)

    # --- Demo shapes consistent with the module: (B, n_labels, L, L) ---
    B, n_labels, L = 2, 4, 16
    y_pred = (jax.random.normal(k1, (B, n_labels, L, L), dtype=jnp.float32)
              * 3.0).astype(jnp.bfloat16)
    y_true = (jax.random.uniform(k2, (B, n_labels, L, L)) < 0.1).astype(jnp.int8)

    loss = jax.block_until_ready(global_ptr_loss(y_pred, y_true))
    ref = jax.block_until_ready(_reference_loss(y_pred, y_true))
    assert jnp.allclose(loss, ref, rtol=2e-4, atol=2e-4), (loss, ref)

    # --- Second config exercising the multi-tile paths: online-LSE over two
    #     C blocks, three row tiles incl. a masked partial last tile. ---
    B2, n2, L2sz = 2, 40, 32          # R = 80 (32+32+16 rows), C = 1024 (2x512)
    y_pred2 = (jax.random.normal(k3, (B2, n2, L2sz, L2sz), dtype=jnp.float32)
               * 3.0).astype(jnp.bfloat16)
    y_true2 = (jax.random.uniform(k4, (B2, n2, L2sz, L2sz)) < 0.05).astype(jnp.int8)

    loss2 = jax.block_until_ready(
        global_ptr_loss(y_pred2, y_true2, tile_r=32, tile_c=512))
    ref2 = jax.block_until_ready(_reference_loss(y_pred2, y_true2))
    assert jnp.allclose(loss2, ref2, rtol=2e-4, atol=2e-4), (loss2, ref2)

    print("KERNEL_OK")
</pallas_src>

<mosaic_0001>
module attributes {stable_mosaic.version = 11 : i64} {
  func.func @_global_ptr_loss_kernel(%arg0: i32, %arg1: i32, %arg2: memref<8x256xbf16, #tpu.memory_space<vmem>>, %arg3: memref<8x256xi8, #tpu.memory_space<vmem>>, %arg4: memref<1x1x1xf32, #tpu.memory_space<vmem>>, %arg5: memref<8x1xf32, #tpu.memory_space<vmem>>, %arg6: memref<8x1xf32, #tpu.memory_space<vmem>>, %arg7: memref<8x1xf32, #tpu.memory_space<vmem>>, %arg8: memref<8x1xf32, #tpu.memory_space<vmem>>) attributes {dimension_semantics = [#tpu.dimension_semantics<parallel>, #tpu.dimension_semantics<arbitrary>], iteration_bounds = array<i64: 1, 1>, scalar_prefetch = 0 : i64, scratch_operands = 4 : i64, tpu.core_type = #tpu.core_type<tc>, window_params = [{transform_indices = @transform_0, window_bounds = array<i64: 8, 256>}, {transform_indices = @transform_1, window_bounds = array<i64: 8, 256>}, {transform_indices = @transform_2, window_bounds = array<i64: 1, 1, 1>}]} {
    %c0_i32 = arith.constant 0 : i32
    %0 = arith.cmpi eq, %arg1, %c0_i32 : i32
    %1 = arith.extui %0 : i1 to i32
    %c0_i32_0 = arith.constant 0 : i32
    %2 = arith.cmpi ne, %1, %c0_i32_0 : i32
    scf.if %2 {
      %cst_28 = arith.constant 0.000000e+00 : f32
      %49 = vector.broadcast %cst_28 : f32 to vector<8x1xf32>
      %c0_29 = arith.constant 0 : index
      %c0_30 = arith.constant 0 : index
      %50 = vector.load %arg5[%c0_29, %c0_30] : memref<8x1xf32, #tpu.memory_space<vmem>>, vector<8x1xf32>
      tpu.vector_store %arg5[%c0_29, %c0_30], %49 {strides = array<i32>} : memref<8x1xf32, #tpu.memory_space<vmem>>, vector<8x1xf32>,
      %cst_31 = arith.constant 1.000000e+00 : f32
      %51 = vector.broadcast %cst_31 : f32 to vector<8x1xf32>
      %c0_32 = arith.constant 0 : index
      %c0_33 = arith.constant 0 : index
      %52 = vector.load %arg6[%c0_32, %c0_33] : memref<8x1xf32, #tpu.memory_space<vmem>>, vector<8x1xf32>
      tpu.vector_store %arg6[%c0_32, %c0_33], %51 {strides = array<i32>} : memref<8x1xf32, #tpu.memory_space<vmem>>, vector<8x1xf32>,
      %cst_34 = arith.constant 0.000000e+00 : f32
      %53 = vector.broadcast %cst_34 : f32 to vector<8x1xf32>
      %c0_35 = arith.constant 0 : index
      %c0_36 = arith.constant 0 : index
      %54 = vector.load %arg7[%c0_35, %c0_36] : memref<8x1xf32, #tpu.memory_space<vmem>>, vector<8x1xf32>
      tpu.vector_store %arg7[%c0_35, %c0_36], %53 {strides = array<i32>} : memref<8x1xf32, #tpu.memory_space<vmem>>, vector<8x1xf32>,
      %cst_37 = arith.constant 1.000000e+00 : f32
      %55 = vector.broadcast %cst_37 : f32 to vector<8x1xf32>
      %c0_38 = arith.constant 0 : index
      %c0_39 = arith.constant 0 : index
      %56 = vector.load %arg8[%c0_38, %c0_39] : memref<8x1xf32, #tpu.memory_space<vmem>>, vector<8x1xf32>
      tpu.vector_store %arg8[%c0_38, %c0_39], %55 {strides = array<i32>} : memref<8x1xf32, #tpu.memory_space<vmem>>, vector<8x1xf32>,
    } else {
    }
    %c0 = arith.constant 0 : index
    %c0_1 = arith.constant 0 : index
    %3 = vector.load %arg2[%c0, %c0_1] : memref<8x256xbf16, #tpu.memory_space<vmem>>, vector<8x256xbf16>
    %4 = arith.extf %3 : vector<8x256xbf16> to vector<8x256xf32>
    %c0_2 = arith.constant 0 : index
    %c0_3 = arith.constant 0 : index
    %5 = vector.load %arg3[%c0_2, %c0_3] : memref<8x256xi8, #tpu.memory_space<vmem>>, vector<8x256xi8>
    %c0_i8 = arith.constant 0 : i8
    %6 = vector.broadcast %c0_i8 : i8 to vector<8x256xi8>
    %7 = arith.cmpi ne, %5, %6 : vector<8x256xi8>
    %cst = arith.constant -9.99999995E+11 : f32
    %8 = vector.broadcast %cst : f32 to vector<8x256xf32>
    %9 = arith.select %7, %8, %4 : vector<8x256xi1>, vector<8x256xf32>
    %cst_4 = arith.constant 0.000000e+00 : f32
    %10 = vector.broadcast %cst_4 : f32 to vector<8x256xf32>
    %11 = arith.subf %10, %4 : vector<8x256xf32>
    %cst_5 = arith.constant -9.99999995E+11 : f32
    %12 = vector.broadcast %cst_5 : f32 to vector<8x256xf32>
    %13 = arith.select %7, %11, %12 : vector<8x256xi1>, vector<8x256xf32>
    %c0_6 = arith.constant 0 : index
    %c0_7 = arith.constant 0 : index
    %14 = vector.load %arg5[%c0_6, %c0_7] : memref<8x1xf32, #tpu.memory_space<vmem>>, vector<8x1xf32>
    %cst_8 = arith.constant dense<0xFF800000> : vector<8xf32>
    %15 = vector.multi_reduction <maximumf>, %9, %cst_8 [1] : vector<8x256xf32> to vector<8xf32>
    %16 = vector.shape_cast %15 : vector<8xf32> to vector<8x1xf32>
    %17 = arith.maximumf %14, %16 : vector<8x1xf32>
    %18 = vector.broadcast %17 : vector<8x1xf32> to vector<8x256xf32>
    %19 = arith.subf %9, %18 : vector<8x256xf32>
    %20 = math.exp %19 : vector<8x256xf32>
    %cst_9 = arith.constant dense<0.000000e+00> : vector<8xf32>
    %21 = vector.multi_reduction <add>, %20, %cst_9 [1] : vector<8x256xf32> to vector<8xf32>
    %22 = vector.shape_cast %21 : vector<8xf32> to vector<8x1xf32>
    %c0_10 = arith.constant 0 : index
    %c0_11 = arith.constant 0 : index
    %23 = vector.load %arg6[%c0_10, %c0_11] : memref<8x1xf32, #tpu.memory_space<vmem>>, vector<8x1xf32>
    %24 = arith.subf %14, %17 : vector<8x1xf32>
    %25 = math.exp %24 : vector<8x1xf32>
    %26 = arith.mulf %23, %25 : vector<8x1xf32>
    %27 = arith.addf %26, %22 : vector<8x1xf32>
    %c0_12 = arith.constant 0 : index
    %c0_13 = arith.constant 0 : index
    %28 = vector.load %arg6[%c0_12, %c0_13] : memref<8x1xf32, #tpu.memory_space<vmem>>, vector<8x1xf32>
    tpu.vector_store %arg6[%c0_12, %c0_13], %27 {strides = array<i32>} : memref<8x1xf32, #tpu.memory_space<vmem>>, vector<8x1xf32>,
    %c0_14 = arith.constant 0 : index
    %c0_15 = arith.constant 0 : index
    %29 = vector.load %arg5[%c0_14, %c0_15] : memref<8x1xf32, #tpu.memory_space<vmem>>, vector<8x1xf32>
    tpu.vector_store %arg5[%c0_14, %c0_15], %17 {strides = array<i32>} : memref<8x1xf32, #tpu.memory_space<vmem>>, vector<8x1xf32>,
    %c0_16 = arith.constant 0 : index
    %c0_17 = arith.constant 0 : index
    %30 = vector.load %arg7[%c0_16, %c0_17] : memref<8x1xf32, #tpu.memory_space<vmem>>, vector<8x1xf32>
    %cst_18 = arith.constant dense<0xFF800000> : vector<8xf32>
    %31 = vector.multi_reduction <maximumf>, %13, %cst_18 [1] : vector<8x256xf32> to vector<8xf32>
    %32 = vector.shape_cast %31 : vector<8xf32> to vector<8x1xf32>
    %33 = arith.maximumf %30, %32 : vector<8x1xf32>
    %34 = vector.broadcast %33 : vector<8x1xf32> to vector<8x256xf32>
    %35 = arith.subf %13, %34 : vector<8x256xf32>
    %36 = math.exp %35 : vector<8x256xf32>
    %cst_19 = arith.constant dense<0.000000e+00> : vector<8xf32>
    %37 = vector.multi_reduction <add>, %36, %cst_19 [1] : vector<8x256xf32> to vector<8xf32>
    %38 = vector.shape_cast %37 : vector<8xf32> to vector<8x1xf32>
    %c0_20 = arith.constant 0 : index
    %c0_21 = arith.constant 0 : index
    %39 = vector.load %arg8[%c0_20, %c0_21] : memref<8x1xf32, #tpu.memory_space<vmem>>, vector<8x1xf32>
    %40 = arith.subf %30, %33 : vector<8x1xf32>
    %41 = math.exp %40 : vector<8x1xf32>
    %42 = arith.mulf %39, %41 : vector<8x1xf32>
    %43 = arith.addf %42, %38 : vector<8x1xf32>
    %c0_22 = arith.constant 0 : index
    %c0_23 = arith.constant 0 : index
    %44 = vector.load %arg8[%c0_22, %c0_23] : memref<8x1xf32, #tpu.memory_space<vmem>>, vector<8x1xf32>
    tpu.vector_store %arg8[%c0_22, %c0_23], %43 {strides = array<i32>} : memref<8x1xf32, #tpu.memory_space<vmem>>, vector<8x1xf32>,
    %c0_24 = arith.constant 0 : index
    %c0_25 = arith.constant 0 : index
    %45 = vector.load %arg7[%c0_24, %c0_25] : memref<8x1xf32, #tpu.memory_space<vmem>>, vector<8x1xf32>
    tpu.vector_store %arg7[%c0_24, %c0_25], %33 {strides = array<i32>} : memref<8x1xf32, #tpu.memory_space<vmem>>, vector<8x1xf32>,
    %c0_i32_26 = arith.constant 0 : i32
    %46 = arith.cmpi eq, %arg1, %c0_i32_26 : i32
    %47 = arith.extui %46 : i1 to i32
    %c0_i32_27 = arith.constant 0 : i32
    %48 = arith.cmpi ne, %47, %c0_i32_27 : i32
    scf.if %48 {
      %c0_28 = arith.constant 0 : index
      %c0_29 = arith.constant 0 : index
      %49 = vector.load %arg5[%c0_28, %c0_29] : memref<8x1xf32, #tpu.memory_space<vmem>>, vector<8x1xf32>
      %c0_30 = arith.constant 0 : index
      %c0_31 = arith.constant 0 : index
      %50 = vector.load %arg6[%c0_30, %c0_31] : memref<8x1xf32, #tpu.memory_space<vmem>>, vector<8x1xf32>
      %51 = math.log %50 : vector<8x1xf32>
      %52 = arith.addf %49, %51 : vector<8x1xf32>
      %c0_32 = arith.constant 0 : index
      %c0_33 = arith.constant 0 : index
      %53 = vector.load %arg7[%c0_32, %c0_33] : memref<8x1xf32, #tpu.memory_space<vmem>>, vector<8x1xf32>
      %c0_34 = arith.constant 0 : index
      %c0_35 = arith.constant 0 : index
      %54 = vector.load %arg8[%c0_34, %c0_35] : memref<8x1xf32, #tpu.memory_space<vmem>>, vector<8x1xf32>
      %55 = math.log %54 : vector<8x1xf32>
      %56 = arith.addf %53, %55 : vector<8x1xf32>
      %57 = arith.addf %52, %56 : vector<8x1xf32>
      %c8_i32 = arith.constant 8 : i32
      %58 = arith.muli %arg0, %c8_i32 : i32
      %59 = tpu.iota {dimensions = array<i32: 0>} : vector<8x1xi32>
      %60 = vector.broadcast %58 : i32 to vector<8x1xi32>
      %61 = arith.addi %60, %59 : vector<8x1xi32>
      %c8_i32_36 = arith.constant 8 : i32
      %62 = vector.broadcast %c8_i32_36 : i32 to vector<8x1xi32>
      %63 = arith.cmpi slt, %61, %62 : vector<8x1xi32>
      %cst_37 = arith.constant 0.000000e+00 : f32
      %64 = vector.broadcast %cst_37 : f32 to vector<8x1xf32>
      %65 = arith.select %63, %57, %64 : vector<8x1xi1>, vector<8x1xf32>
      %cst_38 = arith.constant dense<0.000000e+00> : vector<1xf32>
      %66 = vector.multi_reduction <add>, %65, %cst_38 [0] : vector<8x1xf32> to vector<1xf32>
      %67 = vector.shape_cast %66 : vector<1xf32> to vector<1x1xf32>
      %c0_39 = arith.constant 0 : index
      %c0_40 = arith.constant 0 : index
      %c0_41 = arith.constant 0 : index
      %68 = vector.load %arg4[%c0_39, %c0_40, %c0_41] : memref<1x1x1xf32, #tpu.memory_space<vmem>>, vector<1x1x1xf32>
      %69 = vector.shape_cast %68 : vector<1x1x1xf32> to vector<1x1xf32>
      %70 = vector.shape_cast %67 : vector<1x1xf32> to vector<1x1x1xf32>
      tpu.vector_store %arg4[%c0_39, %c0_40, %c0_41], %70 {strides = array<i32>} : memref<1x1x1xf32, #tpu.memory_space<vmem>>, vector<1x1x1xf32>,
    } else {
    }
    return
  }
  func.func @transform_0(%arg0: i32, %arg1: i32) -> (i32, i32) {
    %c0_i32 = arith.constant 0 : i32
    return %arg0, %arg1 : i32, i32
  }
  func.func @transform_1(%arg0: i32, %arg1: i32) -> (i32, i32) {
    %c0_i32 = arith.constant 0 : i32
    return %arg0, %arg1 : i32, i32
  }
  func.func @transform_2(%arg0: i32, %arg1: i32) -> (i32, i32, i32) {
    %c0_i32 = arith.constant 0 : i32
    %c0_i32_0 = arith.constant 0 : i32
    %c0_i32_1 = arith.constant 0 : i32
    return %arg0, %c0_i32, %c0_i32_0 : i32, i32, i32
  }
}

</mosaic_0001>

<llo_original>
// kernel: global_ptr_loss.1
$region0: #{global_ptr_loss.1}
  #allocation0 [shape = 'u32[]', space=smem, size = 0x4, offset = 0x4, fixed_abs, tag = 'smem constant byte address 0x4 - core index']
  #allocation1 [shape = 'u32[144,128]{1,0:T(1,128)}', space=vmem, size = 0x12000, scoped, tag = 'internal scratch']
  #allocation2 [shape = 'f32[8,1]{1,0:T(8,128)}', space=vmem, size = 0x1000, scoped, tag = 'scratch operand']
  #allocation3 [shape = 'f32[8,1]{1,0:T(8,128)}', space=vmem, size = 0x1000, scoped, tag = 'scratch operand']
  #allocation4 [shape = 'f32[8,1]{1,0:T(8,128)}', space=vmem, size = 0x1000, scoped, tag = 'scratch operand']
  #allocation5 [shape = 'f32[8,1]{1,0:T(8,128)}', space=vmem, size = 0x1000, scoped, tag = 'scratch operand']
  %s0 = inlined_call_operand.vmem [shape: bf16[8,256], index: 0, kind: input, shape index: {}]
  %s1 = inlined_call_operand.vmem [shape: s8[8,256], index: 1, kind: input, shape index: {}]
  %s2 = inlined_call_operand.hbm [shape: f32[1,1,1], index: 2, kind: output, shape index: {}]
  %s3 = sld [smem:[#allocation0]]
  $region26: #{global_ptr_loss.1} parent=0
    _
  %s5 = ssub.s32 1, %s3
  %s6 = scalar_select 0, %s5, %s3
  $region1: #{global_ptr_loss.1} parent=0
    #allocation6 [shape = 'u8[512]{0}', space=vmem, size = 0x400, scoped, tag = 'output window, operand 0, single buffered']
    #allocation7 [shape = 's32[1]{0}', space=sflag, size = 0x4, scoped, tag = 'scoped memory for global_ptr_loss.1']
    %7 = vsyncpa [#allocation7], 0
    // Predicated region
    $region2: #{global_ptr_loss.1} parent=1 // pred_check
      _
    $region3: #{global_ptr_loss.1} parent=1 // pred_check_branch
      %9 = sbr.rel (0) target = $region5
    $region4: #{global_ptr_loss.1} parent=1 // pred_region
      _
    $region5: #{global_ptr_loss.1} parent=1 // pred_fallthru
      _
    // Predicated region
    $region6: #{global_ptr_loss.1} parent=1 // pred_check
      _
    $region7: #{global_ptr_loss.1} parent=1 // pred_check_branch
      %11 = sbr.rel (0) target = $region9
    $region8: #{global_ptr_loss.1} parent=1 // pred_region
      _
    $region9: #{global_ptr_loss.1} parent=1 // pred_fallthru
      _
    %p14 = scmp.eq.s32.totalorder 0, 0
    // Predicated region
    $region10: #{global_ptr_loss.1} parent=1 // pred_check
      %p15 = pneg %p14
    $region11: #{global_ptr_loss.1} parent=1 // pred_check_branch
      %17 = sbr.rel (%p15) target = $region13
    $region12: #{global_ptr_loss.1} parent=1 // pred_region
      %vm18 = vcmask 7168
      %19 = vst.msk [vmem:[#allocation2] sm:$0xff] %vm18, 0.0
      %20 = vst.msk [vmem:[#allocation3] sm:$0xff] %vm18, 1.0
      %21 = vst.msk [vmem:[#allocation4] sm:$0xff] %vm18, 0.0
      %22 = vst.msk [vmem:[#allocation5] sm:$0xff] %vm18, 1.0
    $region13: #{global_ptr_loss.1} parent=1 // pred_fallthru
      _
    %v23 = vld [vmem:[%s0] sm:$0xff]
    %v24 = vunpack.c.l.bf16 %v23
    %v25 = vunpack.c.h.bf16 %v23
    %v26 = vld [vmem:[%s1] sm:$0xf]
    %vm27 = vnez %v26
    %v28 = vsel %vm27, 16843009, 0
    %v29 = vunpack.c.0.s8 %v28
    %v30 = vunpack.c.1.s8 %v28
    %vm31 = vcmp.ne.s32.totalorder %v29, 0
    %vm32 = vcmp.ne.s32.totalorder %v30, 0
    %v33 = vsel %vm31, -1e+12, %v24
    %v34 = vsel %vm32, -1e+12, %v25
    %v35 = vsub.f32 0.0, %v24
    %v36 = vsub.f32 0.0, %v25
    %v37 = vsel %vm31, %v35, -1e+12
    %v38 = vsel %vm32, %v36, -1e+12
    %v39 = vld [vmem:[#allocation2] sm:$0xff]
    %v40 = vmax.f32 %v33, %v34
    %41 = vmax.xlane.f32.xlu0 %v40
    %v42 = vpop.xlane.xlu0 %41
    %v43 = vmax.f32 %v39, %v42
    %45 = vset.pattern.permute.xlu0 0
    %46 = vperm.xlu0 %45, %v43
    %v47 = vpop.permute.xlu0 %46
    %v49 = vsub.f32 %v33, %v47
    %v50 = vsub.f32 %v34, %v47
    %v51 = vmul.f32 %v49, 1.442695
    %v52 = vpow.pop %v51
    %v53 = vmul.f32 %v50, 1.442695
    %v54 = vpow.pop %v53
    %v55 = vadd.f32 %v52, %v54
    %56 = vadd.xlane.f32.xlu0 %v55
    %v57 = vpop.xlane.xlu0 %56
    %v58 = vld [vmem:[#allocation3] sm:$0xff]
    %v59 = vsub.f32 %v39, %v43
    %v60 = vmul.f32 %v59, 1.442695
    %v61 = vpow.pop %v60
    %v62 = vmul.f32 %v58, %v61
    %v63 = vadd.f32 %v62, %v57
    %vm64 = vcmask 7168
    %65 = vst.msk [vmem:[#allocation3] sm:$0xff] %vm64, %v63
    %66 = vst.msk [vmem:[#allocation2] sm:$0xff] %vm64, %v43
    %v67 = vld [vmem:[#allocation4] sm:$0xff]
    %v68 = vmax.f32 %v37, %v38
    %69 = vmax.xlane.f32.xlu0 %v68
    %v70 = vpop.xlane.xlu0 %69
    %v71 = vmax.f32 %v67, %v70
    %73 = vset.pattern.permute.xlu0 0
    %74 = vperm.xlu0 %73, %v71
    %v75 = vpop.permute.xlu0 %74
    %v77 = vsub.f32 %v37, %v75
    %v78 = vsub.f32 %v38, %v75
    %v79 = vmul.f32 %v77, 1.442695
    %v80 = vpow.pop %v79
    %v81 = vmul.f32 %v78, 1.442695
    %v82 = vpow.pop %v81
    %v83 = vadd.f32 %v80, %v82
    %84 = vadd.xlane.f32.xlu0 %v83
    %v85 = vpop.xlane.xlu0 %84
    %v86 = vld [vmem:[#allocation5] sm:$0xff]
    %v87 = vsub.f32 %v67, %v71
    %v88 = vmul.f32 %v87, 1.442695
    %v89 = vpow.pop %v88
    %v90 = vmul.f32 %v86, %v89
    %v91 = vadd.f32 %v90, %v85
    %92 = vst.msk [vmem:[#allocation5] sm:$0xff] %vm64, %v91
    %93 = vst.msk [vmem:[#allocation4] sm:$0xff] %vm64, %v71
    // Predicated region
    $region14: #{global_ptr_loss.1} parent=1 // pred_check
      %p94 = pneg %p14
    $region15: #{global_ptr_loss.1} parent=1 // pred_check_branch
      %96 = sbr.rel (%p94) target = $region17
    $region16: #{global_ptr_loss.1} parent=1 // pred_region
      %v97 = vld [vmem:[#allocation2] sm:$0xff]
      %v98 = vld [vmem:[#allocation3] sm:$0xff]
      %v99 = vlog2.pop %v98
      %v100 = vmul.f32 %v99, 0.6931472
      %v101 = vadd.f32 %v97, %v100
      %v102 = vld [vmem:[#allocation4] sm:$0xff]
      %v103 = vld [vmem:[#allocation5] sm:$0xff]
      %v104 = vlog2.pop %v103
      %v105 = vmul.f32 %v104, 0.6931472
      %v106 = vadd.f32 %v102, %v105
      %v107 = vadd.f32 %v101, %v106
      %s108 = smul.u32 0, 8
      %v109 = vlaneseq
      %v110 = vshrl.u32 %v109, 7
      %v111 = vstv %s108
      %v112 = vadd.s32 %v111, %v110
      %vm113 = vcmp.lt.s32.totalorder %v112, 8
      %v114 = vsel %vm113, %v107, 0.0
      %v115 = vsel %vm64, %v114, 0.0
      %v116 = vrot.slane %v115, 4
      %v117 = vadd.f32 %v115, %v116
      %v118 = vrot.slane %v117, 2
      %v119 = vadd.f32 %v117, %v118
      %v120 = vrot.slane %v119, 1
      %v121 = vadd.f32 %v119, %v120
      %vm122 = vcmask 0
      %123 = vst.msk [vmem:[#allocation6] sm:$0x1] %vm122, %v121
    $region17: #{global_ptr_loss.1} parent=1 // pred_fallthru
      _
    // Predicated region
    $region18: #{global_ptr_loss.1} parent=1 // pred_check
      _
    $region19: #{global_ptr_loss.1} parent=1 // pred_check_branch
      %125 = sbr.rel (0) target = $region21
    $region20: #{global_ptr_loss.1} parent=1 // pred_region
      %s127 = ssub.s32 16, 16
      %128 = vsyncadd [#allocation7], %s127
      %s130 = sshll.u32 [#allocation6], 4
      %s131 = int_to_ptr.vmem [resolvable:$true] %s130
      %133 = dma.vmem_to_hbm [thread:$0]  %s131, 16, %s2, [#allocation7]
    $region21: #{global_ptr_loss.1} parent=1 // pred_fallthru
      _
    // Predicated region
    $region22: #{global_ptr_loss.1} parent=1 // pred_check
      _
    $region23: #{global_ptr_loss.1} parent=1 // pred_check_branch
      %135 = sbr.rel (0) target = $region25
    $region24: #{global_ptr_loss.1} parent=1 // pred_region
      %136 = dma.done [#allocation7], 16
    $region25: #{global_ptr_loss.1} parent=1 // pred_fallthru
      _
    %137 = vsyncpa [#allocation7], 1

</llo_original>
